<compile_context>
chip_gen: v7x
topology: tpu7x:2x2x1
jax: 0.10.0
libtpu: 0.0.40
codegen_flags: <defaults>
</compile_context>

<pallas_src>
import functools

import jax
import jax.numpy as jnp
from jax import lax
from jax.experimental import pallas as pl
from jax.experimental.pallas import tpu as pltpu

F_LANE = 128  # lane width: pad feature dims to multiples of this


def _round_up(x, m):
    return ((x + m - 1) // m) * m


def _node_tiling(n):
    """Returns (n_padded, tm, tk) with tm|n_padded, tk|n_padded and blocks
    that satisfy the (8,128) tiling rule."""
    if n <= 512:
        n_pad = _round_up(n, 8)
        return n_pad, n_pad, n_pad          # single block, grid (1,1)
    n_pad = _round_up(n, 512)
    return n_pad, 256, 512                  # ~2 MiB of live VMEM buffers


# ----------------------------------------------------------------------------
# Kernel 1: d = rsqrt(rowsum(A_tilde)) with zero-degree guard  -> (N, 1)
# ----------------------------------------------------------------------------
def _degree_kernel(a_ref, d_ref, acc_ref):
    k = pl.program_id(1)

    @pl.when(k == 0)
    def _():
        acc_ref[...] = jnp.zeros_like(acc_ref)

    acc_ref[...] += jnp.sum(a_ref[...], axis=1, keepdims=True)

    @pl.when(k == pl.num_programs(1) - 1)
    def _():
        s = acc_ref[...]
        # matches torch.nan_to_num(deg**-0.5, posinf=0): deg<=0 -> 0
        d_ref[...] = jnp.where(s > 0.0, lax.rsqrt(s), 0.0)


def compute_deg_inv_sqrt(a_tilde_p, tm, tk):
    n_pad = a_tilde_p.shape[0]
    return pl.pallas_call(
        _degree_kernel,
        out_shape=jax.ShapeDtypeStruct((n_pad, 1), jnp.float32),
        grid_spec=pltpu.PrefetchScalarGridSpec(
            num_scalar_prefetch=0,
            grid=(n_pad // tm, n_pad // tk),
            in_specs=[pl.BlockSpec((tm, tk), lambda i, k: (i, k))],
            out_specs=pl.BlockSpec((tm, 1), lambda i, k: (i, 0)),
            scratch_shapes=[pltpu.VMEM((tm, 1), jnp.float32)],
        ),
        compiler_params=pltpu.CompilerParams(
            dimension_semantics=("parallel", "arbitrary")),
    )(a_tilde_p)


# ----------------------------------------------------------------------------
# Kernel 2: XW = x @ W   (small matmul done first -> reassociation win)
# ----------------------------------------------------------------------------
def _xw_kernel(x_ref, w_ref, o_ref):
    o_ref[...] = jnp.dot(x_ref[...], w_ref[...],
                         preferred_element_type=jnp.float32)


def feature_transform(x_p, w_p, tm):
    n_pad, f_in = x_p.shape
    f_out = w_p.shape[1]
    return pl.pallas_call(
        _xw_kernel,
        out_shape=jax.ShapeDtypeStruct((n_pad, f_out), jnp.float32),
        grid_spec=pltpu.PrefetchScalarGridSpec(
            num_scalar_prefetch=0,
            grid=(n_pad // tm,),
            in_specs=[
                pl.BlockSpec((tm, f_in), lambda i: (i, 0)),
                pl.BlockSpec((f_in, f_out), lambda i: (0, 0)),
            ],
            out_specs=pl.BlockSpec((tm, f_out), lambda i: (i, 0)),
        ),
        compiler_params=pltpu.CompilerParams(
            dimension_semantics=("parallel",)),
        cost_estimate=pl.CostEstimate(
            flops=2 * n_pad * f_in * f_out,
            transcendentals=0,
            bytes_accessed=4 * (n_pad * f_in + f_in * f_out + n_pad * f_out)),
    )(x_p, w_p)


# ----------------------------------------------------------------------------
# Kernel 3: out = act( (d_i * A_tilde * d_j) @ XW )  with fused normalization
# ----------------------------------------------------------------------------
def _aggregate_kernel(a_ref, dcol_ref, drow_ref, xw_ref, o_ref, acc_ref, *,
                      apply_relu):
    k = pl.program_id(1)

    @pl.when(k == 0)
    def _():
        acc_ref[...] = jnp.zeros_like(acc_ref)

    # Fused D^{-1/2} A D^{-1/2} tile scaling on the VPU (no A_hat in HBM).
    a_hat_tile = a_ref[...] * dcol_ref[...] * drow_ref[...]
    acc_ref[...] += jnp.dot(a_hat_tile, xw_ref[...],
                            preferred_element_type=jnp.float32)

    @pl.when(k == pl.num_programs(1) - 1)
    def _():
        out = acc_ref[...]
        if apply_relu:
            out = jnp.maximum(out, 0.0)
        o_ref[...] = out.astype(o_ref.dtype)


def aggregate(a_tilde_p, d_col, d_row, xw_p, *, apply_relu, tm, tk):
    n_pad = a_tilde_p.shape[0]
    f_out = xw_p.shape[1]
    kern = functools.partial(_aggregate_kernel, apply_relu=apply_relu)
    return pl.pallas_call(
        kern,
        out_shape=jax.ShapeDtypeStruct((n_pad, f_out), jnp.float32),
        grid_spec=pltpu.PrefetchScalarGridSpec(
            num_scalar_prefetch=0,
            grid=(n_pad // tm, n_pad // tk),
            in_specs=[
                pl.BlockSpec((tm, tk), lambda i, k: (i, k)),       # A_tilde
                pl.BlockSpec((tm, 1), lambda i, k: (i, 0)),        # d (rows)
                pl.BlockSpec((1, tk), lambda i, k: (0, k)),        # d (cols)
                pl.BlockSpec((tk, f_out), lambda i, k: (k, 0)),    # XW
            ],
            out_specs=pl.BlockSpec((tm, f_out), lambda i, k: (i, 0)),
            scratch_shapes=[pltpu.VMEM((tm, f_out), jnp.float32)],
        ),
        compiler_params=pltpu.CompilerParams(
            dimension_semantics=("parallel", "arbitrary")),
        cost_estimate=pl.CostEstimate(
            flops=2 * n_pad * n_pad * f_out + 2 * n_pad * n_pad,
            transcendentals=0,
            bytes_accessed=4 * (n_pad * n_pad + 2 * n_pad
                                + 2 * n_pad * f_out)),
    )(a_tilde_p, d_col, d_row, xw_p)


# ----------------------------------------------------------------------------
# Model wrapper
# ----------------------------------------------------------------------------
def init_gcn_params(key, in_dim, hidden_dim, n_class, n_layer=2):
    """nn.Linear(bias=False) weights stored transposed as (in, out)."""
    params = []
    for i in range(n_layer):
        if i == n_layer - 1:
            _in = hidden_dim if i > 0 else in_dim
            _out = n_class
        elif i == 0:
            _in, _out = in_dim, hidden_dim
        else:
            _in, _out = hidden_dim, hidden_dim
        key, sub = jax.random.split(key)
        bound = 1.0 / (_in ** 0.5)
        params.append(jax.random.uniform(sub, (_in, _out), jnp.float32,
                                         -bound, bound))
    return params


def gcn_model_forward(a_tilde, x, params, residual=True):
    n = a_tilde.shape[0]
    n_pad, tm, tk = _node_tiling(n)

    # Zero-pad node dim (padded nodes get degree 0 -> contribute nothing).
    a_p = jnp.zeros((n_pad, n_pad), jnp.float32).at[:n, :n].set(
        a_tilde.astype(jnp.float32))
    d_col = compute_deg_inv_sqrt(a_p, tm, tk)      # (n_pad, 1)
    d_row = d_col.reshape(1, n_pad)                # lane-dense column scale

    # Pad activations once: node dim to n_pad, feature dim to a multiple of 128.
    n_layer = len(params)
    f_in0 = params[0].shape[0]
    f_in0_p = _round_up(f_in0, F_LANE)
    h = jnp.zeros((n_pad, f_in0_p), jnp.float32).at[:n, :f_in0].set(
        x.astype(jnp.float32))

    for i, w in enumerate(params):
        f_in, f_out = w.shape
        f_in_p = _round_up(f_in, F_LANE)
        f_out_p = _round_up(f_out, F_LANE)
        w_p = jnp.zeros((f_in_p, f_out_p), jnp.float32).at[:f_in, :f_out].set(w)

        # Reassociated: first the cheap (N,Fin)@(Fin,Fout), then A_hat @ XW.
        xw = feature_transform(h, w_p, tm)
        feat = aggregate(a_p, d_col, d_row, xw,
                         apply_relu=(i != n_layer - 1), tm=tm, tk=tk)
        if residual and f_in == f_out:
            feat = h + feat   # residual branch (never taken for default dims)
        h = feat

    return h[:n, :params[-1].shape[1]]


if __name__ == "__main__":
    N_NODE, IN_DIM, HIDDEN_DIM, N_CLASS = 16, 32, 16, 8

    key = jax.random.PRNGKey(0)
    k_a, k_x, k_p = jax.random.split(key, 3)

    # Symmetric adjacency with self loops (A_tilde), nonnegative.
    a_raw = (jax.random.uniform(k_a, (N_NODE, N_NODE)) > 0.7).astype(jnp.float32)
    a_tilde = jnp.maximum(a_raw, a_raw.T) + jnp.eye(N_NODE, dtype=jnp.float32)

    x = jax.random.normal(k_x, (N_NODE, IN_DIM), dtype=jnp.float32)
    params = init_gcn_params(k_p, IN_DIM, HIDDEN_DIM, N_CLASS, n_layer=2)

    out = gcn_model_forward(a_tilde, x, params)
    jax.block_until_ready(out)
    assert out.shape == (N_NODE, N_CLASS)

    # Pure-jnp reference (same math as the PyTorch module in eval mode).
    deg = a_tilde.sum(axis=1)
    d = jnp.where(deg > 0, deg ** -0.5, 0.0)
    a_hat = d[:, None] * a_tilde * d[None, :]
    ref = x
    for i, w in enumerate(params):
        ref = a_hat @ ref @ w
        if i != len(params) - 1:
            ref = jnp.maximum(ref, 0.0)
    assert jnp.allclose(out, ref, atol=1e-3, rtol=1e-3)

    print("KERNEL_OK")
</pallas_src>

<mosaic_0001>
module attributes {stable_mosaic.version = 11 : i64} {
  func.func @_degree_kernel(%arg0: i32, %arg1: i32, %arg2: memref<16x16xf32, #tpu.memory_space<vmem>>, %arg3: memref<16x1xf32, #tpu.memory_space<vmem>>, %arg4: memref<16x1xf32, #tpu.memory_space<vmem>>) attributes {dimension_semantics = [#tpu.dimension_semantics<parallel>, #tpu.dimension_semantics<arbitrary>], iteration_bounds = array<i64: 1, 1>, scalar_prefetch = 0 : i64, scratch_operands = 1 : i64, tpu.core_type = #tpu.core_type<tc>, window_params = [{transform_indices = @transform_0, window_bounds = array<i64: 16, 16>}, {transform_indices = @transform_1, window_bounds = array<i64: 16, 1>}]} {
    %c0_i32 = arith.constant 0 : i32
    %0 = arith.cmpi eq, %arg1, %c0_i32 : i32
    %1 = arith.extui %0 : i1 to i32
    %c0_i32_0 = arith.constant 0 : i32
    %2 = arith.cmpi ne, %1, %c0_i32_0 : i32
    scf.if %2 {
      %cst_8 = arith.constant 0.000000e+00 : f32
      %12 = vector.broadcast %cst_8 : f32 to vector<16x1xf32>
      %c0_9 = arith.constant 0 : index
      %c0_10 = arith.constant 0 : index
      %13 = vector.load %arg4[%c0_9, %c0_10] : memref<16x1xf32, #tpu.memory_space<vmem>>, vector<16x1xf32>
      tpu.vector_store %arg4[%c0_9, %c0_10], %12 {strides = array<i32>} : memref<16x1xf32, #tpu.memory_space<vmem>>, vector<16x1xf32>,
    } else {
    }
    %c0 = arith.constant 0 : index
    %c0_1 = arith.constant 0 : index
    %3 = vector.load %arg4[%c0, %c0_1] : memref<16x1xf32, #tpu.memory_space<vmem>>, vector<16x1xf32>
    %c0_2 = arith.constant 0 : index
    %c0_3 = arith.constant 0 : index
    %4 = vector.load %arg2[%c0_2, %c0_3] : memref<16x16xf32, #tpu.memory_space<vmem>>, vector<16x16xf32>
    %cst = arith.constant dense<0.000000e+00> : vector<16xf32>
    %5 = vector.multi_reduction <add>, %4, %cst [1] : vector<16x16xf32> to vector<16xf32>
    %6 = vector.shape_cast %5 : vector<16xf32> to vector<16x1xf32>
    %7 = arith.addf %3, %6 : vector<16x1xf32>
    %c0_4 = arith.constant 0 : index
    %c0_5 = arith.constant 0 : index
    %8 = vector.load %arg4[%c0_4, %c0_5] : memref<16x1xf32, #tpu.memory_space<vmem>>, vector<16x1xf32>
    tpu.vector_store %arg4[%c0_4, %c0_5], %7 {strides = array<i32>} : memref<16x1xf32, #tpu.memory_space<vmem>>, vector<16x1xf32>,
    %c0_i32_6 = arith.constant 0 : i32
    %9 = arith.cmpi eq, %arg1, %c0_i32_6 : i32
    %10 = arith.extui %9 : i1 to i32
    %c0_i32_7 = arith.constant 0 : i32
    %11 = arith.cmpi ne, %10, %c0_i32_7 : i32
    scf.if %11 {
      %c0_8 = arith.constant 0 : index
      %c0_9 = arith.constant 0 : index
      %12 = vector.load %arg4[%c0_8, %c0_9] : memref<16x1xf32, #tpu.memory_space<vmem>>, vector<16x1xf32>
      %cst_10 = arith.constant 0.000000e+00 : f32
      %13 = vector.broadcast %cst_10 : f32 to vector<16x1xf32>
      %14 = arith.cmpf ogt, %12, %13 : vector<16x1xf32>
      %15 = math.rsqrt %12 : vector<16x1xf32>
      %cst_11 = arith.constant 0.000000e+00 : f32
      %16 = vector.broadcast %cst_11 : f32 to vector<16x1xf32>
      %17 = arith.select %14, %15, %16 : vector<16x1xi1>, vector<16x1xf32>
      %c0_12 = arith.constant 0 : index
      %c0_13 = arith.constant 0 : index
      %18 = vector.load %arg3[%c0_12, %c0_13] : memref<16x1xf32, #tpu.memory_space<vmem>>, vector<16x1xf32>
      tpu.vector_store %arg3[%c0_12, %c0_13], %17 {strides = array<i32>} : memref<16x1xf32, #tpu.memory_space<vmem>>, vector<16x1xf32>,
    } else {
    }
    return
  }
  func.func @transform_0(%arg0: i32, %arg1: i32) -> (i32, i32) {
    %c0_i32 = arith.constant 0 : i32
    return %arg0, %arg1 : i32, i32
  }
  func.func @transform_1(%arg0: i32, %arg1: i32) -> (i32, i32) {
    %c0_i32 = arith.constant 0 : i32
    %c0_i32_0 = arith.constant 0 : i32
    return %arg0, %c0_i32 : i32, i32
  }
}

</mosaic_0001>

<llo_original>
// kernel: tpu_custom_call.1
$region0: #{tpu_custom_call.1}
  #allocation0 [shape = 'u32[]', space=smem, size = 0x4, offset = 0x4, fixed_abs, tag = 'smem constant byte address 0x4 - core index']
  #allocation1 [shape = 'u32[144,128]{1,0:T(1,128)}', space=vmem, size = 0x12000, scoped, tag = 'internal scratch']
  #allocation2 [shape = 'f32[16,1]{1,0:T(8,128)}', space=vmem, size = 0x2000, scoped, tag = 'scratch operand']
  %s0 = inlined_call_operand.hbm [shape: f32[16,16], index: 0, kind: input, shape index: {}]
  %s1 = inlined_call_operand.vmem [shape: f32[16,1], index: 1, kind: output, shape index: {}]
  %s2 = sld [smem:[#allocation0]]
  $region26: #{tpu_custom_call.1} parent=0
    _
  %s4 = ssub.s32 1, %s2
  %s5 = scalar_select 0, %s4, %s2
  $region1: #{tpu_custom_call.1} parent=0
    #allocation3 [shape = 'u8[8192]{0}', space=vmem, size = 0x2000, scoped, tag = 'input window, operand 0, single buffered']
    #allocation4 [shape = 's32[1]{0}', space=sflag, size = 0x4, scoped, tag = 'scoped memory for tpu_custom_call.1']
    %6 = vsyncpa [#allocation4], 0
    // Predicated region
    $region2: #{tpu_custom_call.1} parent=1 // pred_check
      _
    $region3: #{tpu_custom_call.1} parent=1 // pred_check_branch
      %8 = sbr.rel (0) target = $region5
    $region4: #{tpu_custom_call.1} parent=1 // pred_region
      %s10 = ssub.s32 256, 256
      %11 = vsyncadd [#allocation4], %s10
      %s12 = sshll.u32 [#allocation3], 4
      %s13 = int_to_ptr.vmem [resolvable:$true] %s12
      %18 = dma.hbm_to_vmem [thread:$0]  %s0, 256, %s13, [#allocation4], 128, 128, 8
    $region5: #{tpu_custom_call.1} parent=1 // pred_fallthru
      _
    // Predicated region
    $region6: #{tpu_custom_call.1} parent=1 // pred_check
      _
    $region7: #{tpu_custom_call.1} parent=1 // pred_check_branch
      %20 = sbr.rel (0) target = $region9
    $region8: #{tpu_custom_call.1} parent=1 // pred_region
      %21 = dma.done [#allocation4], 256
    $region9: #{tpu_custom_call.1} parent=1 // pred_fallthru
      _
    %p22 = scmp.eq.s32.totalorder 0, 0
    // Predicated region
    $region10: #{tpu_custom_call.1} parent=1 // pred_check
      %p23 = pneg %p22
    $region11: #{tpu_custom_call.1} parent=1 // pred_check_branch
      %25 = sbr.rel (%p23) target = $region13
    $region12: #{tpu_custom_call.1} parent=1 // pred_region
      %vm26 = vcmask 7168
      %27 = vst.msk [vmem:[#allocation2] sm:$0xff] %vm26, 0.0
      %28 = vst.msk [vmem:[#allocation2 + $0x8] sm:$0xff] %vm26, 0.0
    $region13: #{tpu_custom_call.1} parent=1 // pred_fallthru
      _
    %v29 = vld [vmem:[#allocation2] sm:$0xff]
    %v30 = vld [vmem:[#allocation2 + $0x8] sm:$0xff]
    %v31 = vld [vmem:[#allocation3] sm:$0xff]
    %v32 = vld [vmem:[#allocation3 + $0x8] sm:$0xff]
    %vm33 = vcmask 130048
    %v34 = vsel %vm33, %v31, 0.0
    %35 = vadd.xlane.f32.xlu0 %v34
    %v36 = vpop.xlane.xlu0 %35
    %v37 = vsel %vm33, %v32, 0.0
    %38 = vadd.xlane.f32.xlu0 %v37
    %v39 = vpop.xlane.xlu0 %38
    %v40 = vadd.f32 %v29, %v36
    %v41 = vadd.f32 %v30, %v39
    %vm42 = vcmask 7168
    %43 = vst.msk [vmem:[#allocation2] sm:$0xff] %vm42, %v40
    %44 = vst.msk [vmem:[#allocation2 + $0x8] sm:$0xff] %vm42, %v41
    // Predicated region
    $region14: #{tpu_custom_call.1} parent=1 // pred_check
      %p45 = pneg %p22
    $region15: #{tpu_custom_call.1} parent=1 // pred_check_branch
      %47 = sbr.rel (%p45) target = $region17
    $region16: #{tpu_custom_call.1} parent=1 // pred_region
      %v48 = vld [vmem:[#allocation2] sm:$0xff]
      %v49 = vld [vmem:[#allocation2 + $0x8] sm:$0xff]
      %vm50 = vcmp.gt.f32.partialorder %v48, 0.0
      %vm51 = vcmp.gt.f32.partialorder %v49, 0.0
      %v52 = vrsqrt.pop %v48
      %v53 = vrsqrt.pop %v49
      %v54 = vsel %vm50, %v52, 0.0
      %v55 = vsel %vm51, %v53, 0.0
      %56 = vst.msk [vmem:[%s1] sm:$0xff] %vm42, %v54
      %57 = vst.msk [vmem:[%s1 + $0x8] sm:$0xff] %vm42, %v55
    $region17: #{tpu_custom_call.1} parent=1 // pred_fallthru
      _
    // Predicated region
    $region18: #{tpu_custom_call.1} parent=1 // pred_check
      _
    $region19: #{tpu_custom_call.1} parent=1 // pred_check_branch
      %59 = sbr.rel (0) target = $region21
    $region20: #{tpu_custom_call.1} parent=1 // pred_region
      _
    $region21: #{tpu_custom_call.1} parent=1 // pred_fallthru
      _
    // Predicated region
    $region22: #{tpu_custom_call.1} parent=1 // pred_check
      _
    $region23: #{tpu_custom_call.1} parent=1 // pred_check_branch
      %61 = sbr.rel (0) target = $region25
    $region24: #{tpu_custom_call.1} parent=1 // pred_region
      _
    $region25: #{tpu_custom_call.1} parent=1 // pred_fallthru
      _
    %62 = vsyncpa [#allocation4], 1

</llo_original>
